<compile_context>
chip_gen: v7x
topology: tpu7x:2x2x1
jax: 0.10.0
libtpu: 0.0.40
codegen_flags: <defaults>
</compile_context>

<pallas_src>
import functools

import jax
import jax.numpy as jnp
from jax.experimental import pallas as pl
from jax.experimental.pallas import tpu as pltpu

HIDDEN = 256   # encoder_N_units_per_FC_layer
LATENT = 256   # N_latent


def _round_up(n, m):
    return ((n + m - 1) // m) * m


def _num_tensorcores_per_chip():
    """Best-effort TensorCores per chip (v7x/v5p/v4 have 2; v5e/v6e have 1)."""
    try:
        kind = (jax.devices()[0].device_kind or "").lower()
    except Exception:
        return 1
    return 2 if any(t in kind for t in ("v7", "v5p", "v4")) else 1


def _pick_block_b(batch, n_cores):
    """Batch tile: multiple of 8 (128-aligned when big), large enough to
    amortize the ~0.35 us grid-step overhead, and >= 2 grid steps on dual-TC
    chips so the ("parallel",) grid axis shards across both TensorCores."""
    if n_cores >= 2:
        if batch < 16:
            return _round_up(batch, 8)                 # too small to split
        if batch <= 256:
            return _round_up(pl.cdiv(batch, 2), 8)     # two tiles, one per core
        if batch <= 4096:
            return _round_up(pl.cdiv(batch, 2), 128)   # two 128-aligned tiles
        return 2048                                    # >= 2 big tiles
    # Single-TensorCore chips (v5e / v6e).
    if batch <= 64:
        return _round_up(batch, 8)
    if batch <= 2048:
        return _round_up(batch, 128)                   # whole 128x128 MXU passes
    if batch <= 4096:
        return _round_up(pl.cdiv(batch, 2), 128)
    return 2048


def _encoder_kernel(x_ref, w1_ref, w2_ref, w3_ref, b_ref, o_ref):
    # Fused 3-layer MLP, entirely in VMEM: bf16 x bf16 -> f32 MXU matmuls,
    # f32 bias-add + ReLU epilogues on the VPU.
    x = x_ref[...].astype(jnp.bfloat16)      # in-kernel cast; no wrapper HBM pass
    b = b_ref[...]                           # (3, 256) f32 biases, loaded once

    h1 = jnp.dot(x, w1_ref[...], preferred_element_type=jnp.float32) + b[0:1, :]
    h1 = jnp.maximum(h1, 0.0)

    h2 = jnp.dot(h1.astype(jnp.bfloat16), w2_ref[...],
                 preferred_element_type=jnp.float32) + b[1:2, :]
    h2 = jnp.maximum(h2, 0.0)

    out = jnp.dot(h2.astype(jnp.bfloat16), w3_ref[...],
                  preferred_element_type=jnp.float32) + b[2:3, :]
    o_ref[...] = out.astype(o_ref.dtype)


@functools.partial(jax.jit, static_argnames=("block_b", "out_dtype"))
def encoder_forward(x, prepared, *, block_b=None, out_dtype=None):
    """x: (B, in_dim) float32. prepared: output of prepare_encoder_params."""
    B, in_dim = x.shape
    out_dtype = jnp.dtype(out_dtype) if out_dtype is not None else x.dtype
    if block_b is None:
        block_b = _pick_block_b(B, _num_tensorcores_per_chip())

    w1, w2, w3, b = prepared["w1"], prepared["w2"], prepared["w3"], prepared["b"]

    grid = (pl.cdiv(B, block_b),)

    # Weights / biases: constant index_map -> fetched once, resident in VMEM.
    def resident(shape):
        return pl.BlockSpec(shape, lambda i: (0,) * len(shape))

    flops = 2 * B * (in_dim * HIDDEN + HIDDEN * HIDDEN + HIDDEN * LATENT)
    bytes_accessed = int(
        x.size * x.dtype.itemsize
        + sum(a.size * a.dtype.itemsize for a in (w1, w2, w3, b))
        + B * LATENT * out_dtype.itemsize)

    # Actual VMEM footprint (double-buffered x/out tiles, resident weights with
    # their default second buffer, f32 intermediates) + headroom, capped at
    # 32 MiB so we never request all of v7x's 64 MiB per-core VMEM.
    vmem_limit = (
        2 * block_b * in_dim * x.dtype.itemsize          # x tiles
        + 2 * block_b * LATENT * out_dtype.itemsize      # out tiles
        + 3 * block_b * HIDDEN * 4                       # f32 h1 / h2 / out
        + 2 * sum(a.size * a.dtype.itemsize for a in (w1, w2, w3, b))
        + (2 << 20))                                     # Mosaic scratch headroom
    vmem_limit = int(min(32 * 1024 * 1024, max(4 * 1024 * 1024, vmem_limit)))

    return pl.pallas_call(
        _encoder_kernel,
        out_shape=jax.ShapeDtypeStruct((B, LATENT), out_dtype),
        grid_spec=pltpu.PrefetchScalarGridSpec(
            num_scalar_prefetch=0,
            grid=grid,
            in_specs=[
                pl.BlockSpec((block_b, in_dim), lambda i: (i, 0)),  # raw f32 x tile
                resident(w1.shape),
                resident(w2.shape),
                resident(w3.shape),
                resident(b.shape),
            ],
            out_specs=pl.BlockSpec((block_b, LATENT), lambda i: (i, 0)),
        ),
        compiler_params=pltpu.CompilerParams(
            dimension_semantics=("parallel",),
            vmem_limit_bytes=vmem_limit,
        ),
        cost_estimate=pl.CostEstimate(
            flops=flops, transcendentals=0, bytes_accessed=bytes_accessed),
    )(x, w1, w2, w3, b)


def init_encoder_params(key, in_dim):
    """Mimics nn.Linear default init: U(-1/sqrt(fan_in), +1/sqrt(fan_in)).
    Weights stored as (in_features, out_features) so each layer is x @ W + b."""
    keys = jax.random.split(key, 6)

    def linear(kw, kb, fan_in, fan_out):
        bound = 1.0 / jnp.sqrt(float(fan_in))
        w = jax.random.uniform(kw, (fan_in, fan_out), jnp.float32, -bound, bound)
        b = jax.random.uniform(kb, (1, fan_out), jnp.float32, -bound, bound)
        return w, b

    w1, b1 = linear(keys[0], keys[1], in_dim, HIDDEN)
    w2, b2 = linear(keys[2], keys[3], HIDDEN, HIDDEN)
    w3, b3 = linear(keys[4], keys[5], HIDDEN, LATENT)
    return {"w1": w1, "b1": b1, "w2": w2, "b2": b2, "w3": w3, "b3": b3}


def prepare_encoder_params(params):
    """One-time conversion to kernel operand layout (do NOT call per forward):
    bf16 weights for the MXU; biases stacked into a single (3, 256) f32 array."""
    return {
        "w1": params["w1"].astype(jnp.bfloat16),
        "w2": params["w2"].astype(jnp.bfloat16),
        "w3": params["w3"].astype(jnp.bfloat16),
        "b": jnp.concatenate(
            [params["b1"], params["b2"], params["b3"]], axis=0).astype(jnp.float32),
    }


def encoder_ref_f32(x, params):
    h1 = jnp.maximum(x @ params["w1"] + params["b1"], 0.0)
    h2 = jnp.maximum(h1 @ params["w2"] + params["b2"], 0.0)
    return h2 @ params["w3"] + params["b3"]


def encoder_ref_bf16(x, params):
    """Pure-JAX reference mimicking the kernel numerics (bf16 MXU operands,
    f32 accumulation and epilogue)."""
    bf, f32 = jnp.bfloat16, jnp.float32
    h1 = jnp.dot(x.astype(bf), params["w1"].astype(bf),
                 preferred_element_type=f32) + params["b1"]
    h1 = jnp.maximum(h1, 0.0)
    h2 = jnp.dot(h1.astype(bf), params["w2"].astype(bf),
                 preferred_element_type=f32) + params["b2"]
    h2 = jnp.maximum(h2, 0.0)
    return jnp.dot(h2.astype(bf), params["w3"].astype(bf),
                   preferred_element_type=f32) + params["b3"]


if __name__ == "__main__":
    key = jax.random.PRNGKey(0)
    k_x, k_p = jax.random.split(key)

    B, in_dim = 8, 32
    x = jax.random.normal(k_x, (B, in_dim), jnp.float32)
    params = init_encoder_params(k_p, in_dim)
    prepared = prepare_encoder_params(params)

    out = jax.block_until_ready(encoder_forward(x, prepared))
    assert out.shape == (B, LATENT), out.shape

    # Tight check against a reference using the same bf16/f32 mixed precision.
    ref_mixed = encoder_ref_bf16(x, params)
    assert jnp.allclose(out, ref_mixed, atol=2e-3, rtol=2e-3), \
        "mismatch vs. bf16/f32 mixed-precision reference"
    # Loose sanity check against the full-f32 PyTorch-equivalent math.
    ref_f32 = encoder_ref_f32(x, params)
    assert jnp.allclose(out, ref_f32, atol=1e-1, rtol=1e-1), \
        "mismatch vs. full-f32 reference"

    # Ragged batch (exercises the masked partial-block store) + bf16 output path.
    B2 = 200
    x2 = jax.random.normal(jax.random.PRNGKey(1), (B2, in_dim), jnp.float32)
    out2 = jax.block_until_ready(
        encoder_forward(x2, prepared, out_dtype=jnp.bfloat16))
    assert out2.shape == (B2, LATENT), out2.shape
    ref2 = encoder_ref_bf16(x2, params)
    assert jnp.allclose(out2.astype(jnp.float32), ref2.astype(jnp.float32),
                        atol=3e-2, rtol=3e-2), \
        "mismatch on ragged-batch / bf16-output path"

    print("KERNEL_OK")
</pallas_src>

<mosaic_0001>
module attributes {stable_mosaic.version = 11 : i64} {
  func.func @_encoder_kernel(%arg0: i32, %arg1: memref<8x32xf32, #tpu.memory_space<vmem>>, %arg2: memref<32x256xbf16, #tpu.memory_space<vmem>>, %arg3: memref<256x256xbf16, #tpu.memory_space<vmem>>, %arg4: memref<256x256xbf16, #tpu.memory_space<vmem>>, %arg5: memref<3x256xf32, #tpu.memory_space<vmem>>, %arg6: memref<8x256xf32, #tpu.memory_space<vmem>>) attributes {dimension_semantics = [#tpu.dimension_semantics<parallel>], iteration_bounds = array<i64: 1>, scalar_prefetch = 0 : i64, scratch_operands = 0 : i64, tpu.core_type = #tpu.core_type<tc>, window_params = [{transform_indices = @transform_0, window_bounds = array<i64: 8, 32>}, {pipeline_mode = #tpu.pipeline_mode<synchronous>, transform_indices = @transform_1, window_bounds = array<i64: 32, 256>}, {pipeline_mode = #tpu.pipeline_mode<synchronous>, transform_indices = @transform_2, window_bounds = array<i64: 256, 256>}, {pipeline_mode = #tpu.pipeline_mode<synchronous>, transform_indices = @transform_3, window_bounds = array<i64: 256, 256>}, {pipeline_mode = #tpu.pipeline_mode<synchronous>, transform_indices = @transform_4, window_bounds = array<i64: 3, 256>}, {transform_indices = @transform_5, window_bounds = array<i64: 8, 256>}]} {
    %c0 = arith.constant 0 : index
    %c0_0 = arith.constant 0 : index
    %0 = vector.load %arg1[%c0, %c0_0] : memref<8x32xf32, #tpu.memory_space<vmem>>, vector<8x32xf32>
    %1 = arith.truncf %0 : vector<8x32xf32> to vector<8x32xbf16>
    %c0_1 = arith.constant 0 : index
    %c0_2 = arith.constant 0 : index
    %2 = vector.load %arg5[%c0_1, %c0_2] : memref<3x256xf32, #tpu.memory_space<vmem>>, vector<3x256xf32>
    %c0_3 = arith.constant 0 : index
    %c0_4 = arith.constant 0 : index
    %3 = vector.load %arg2[%c0_3, %c0_4] : memref<32x256xbf16, #tpu.memory_space<vmem>>, vector<32x256xbf16>
    %cst = arith.constant dense<0.000000e+00> : vector<8x256xf32>
    %4 = tpu.matmul %1, %3, %cst {dimension_numbers = #tpu.dot_dimension_numbers<[1], [0], [0], [1], [0, 0, 1, 1], [], []>} : vector<8x32xbf16>, vector<32x256xbf16>, vector<8x256xf32> -> vector<8x256xf32>
    %5 = vector.extract_strided_slice %2 {offsets = [0, 0], sizes = [1, 256], strides = [1, 1]} : vector<3x256xf32> to vector<1x256xf32>
    %6 = vector.broadcast %5 : vector<1x256xf32> to vector<8x256xf32>
    %7 = arith.addf %4, %6 : vector<8x256xf32>
    %cst_5 = arith.constant 0.000000e+00 : f32
    %8 = vector.broadcast %cst_5 : f32 to vector<8x256xf32>
    %9 = arith.maximumf %7, %8 : vector<8x256xf32>
    %10 = arith.truncf %9 : vector<8x256xf32> to vector<8x256xbf16>
    %c0_6 = arith.constant 0 : index
    %c0_7 = arith.constant 0 : index
    %11 = vector.load %arg3[%c0_6, %c0_7] : memref<256x256xbf16, #tpu.memory_space<vmem>>, vector<256x256xbf16>
    %cst_8 = arith.constant dense<0.000000e+00> : vector<8x256xf32>
    %12 = tpu.matmul %10, %11, %cst_8 {dimension_numbers = #tpu.dot_dimension_numbers<[1], [0], [0], [1], [0, 0, 1, 1], [], []>} : vector<8x256xbf16>, vector<256x256xbf16>, vector<8x256xf32> -> vector<8x256xf32>
    %13 = vector.extract_strided_slice %2 {offsets = [1, 0], sizes = [1, 256], strides = [1, 1]} : vector<3x256xf32> to vector<1x256xf32>
    %14 = vector.broadcast %13 : vector<1x256xf32> to vector<8x256xf32>
    %15 = arith.addf %12, %14 : vector<8x256xf32>
    %cst_9 = arith.constant 0.000000e+00 : f32
    %16 = vector.broadcast %cst_9 : f32 to vector<8x256xf32>
    %17 = arith.maximumf %15, %16 : vector<8x256xf32>
    %18 = arith.truncf %17 : vector<8x256xf32> to vector<8x256xbf16>
    %c0_10 = arith.constant 0 : index
    %c0_11 = arith.constant 0 : index
    %19 = vector.load %arg4[%c0_10, %c0_11] : memref<256x256xbf16, #tpu.memory_space<vmem>>, vector<256x256xbf16>
    %cst_12 = arith.constant dense<0.000000e+00> : vector<8x256xf32>
    %20 = tpu.matmul %18, %19, %cst_12 {dimension_numbers = #tpu.dot_dimension_numbers<[1], [0], [0], [1], [0, 0, 1, 1], [], []>} : vector<8x256xbf16>, vector<256x256xbf16>, vector<8x256xf32> -> vector<8x256xf32>
    %21 = vector.extract_strided_slice %2 {offsets = [2, 0], sizes = [1, 256], strides = [1, 1]} : vector<3x256xf32> to vector<1x256xf32>
    %22 = vector.broadcast %21 : vector<1x256xf32> to vector<8x256xf32>
    %23 = arith.addf %20, %22 : vector<8x256xf32>
    %c0_13 = arith.constant 0 : index
    %c0_14 = arith.constant 0 : index
    %24 = vector.load %arg6[%c0_13, %c0_14] : memref<8x256xf32, #tpu.memory_space<vmem>>, vector<8x256xf32>
    tpu.vector_store %arg6[%c0_13, %c0_14], %23 {strides = array<i32>} : memref<8x256xf32, #tpu.memory_space<vmem>>, vector<8x256xf32>,
    return
  }
  func.func @transform_0(%arg0: i32) -> (i32, i32) {
    %c0_i32 = arith.constant 0 : i32
    %c0_i32_0 = arith.constant 0 : i32
    return %arg0, %c0_i32 : i32, i32
  }
  func.func @transform_1(%arg0: i32) -> (i32, i32) {
    %c0_i32 = arith.constant 0 : i32
    %c0_i32_0 = arith.constant 0 : i32
    %c0_i32_1 = arith.constant 0 : i32
    return %c0_i32, %c0_i32_0 : i32, i32
  }
  func.func @transform_2(%arg0: i32) -> (i32, i32) {
    %c0_i32 = arith.constant 0 : i32
    %c0_i32_0 = arith.constant 0 : i32
    %c0_i32_1 = arith.constant 0 : i32
    return %c0_i32, %c0_i32_0 : i32, i32
  }
  func.func @transform_3(%arg0: i32) -> (i32, i32) {
    %c0_i32 = arith.constant 0 : i32
    %c0_i32_0 = arith.constant 0 : i32
    %c0_i32_1 = arith.constant 0 : i32
    return %c0_i32, %c0_i32_0 : i32, i32
  }
  func.func @transform_4(%arg0: i32) -> (i32, i32) {
    %c0_i32 = arith.constant 0 : i32
    %c0_i32_0 = arith.constant 0 : i32
    %c0_i32_1 = arith.constant 0 : i32
    return %c0_i32, %c0_i32_0 : i32, i32
  }
  func.func @transform_5(%arg0: i32) -> (i32, i32) {
    %c0_i32 = arith.constant 0 : i32
    %c0_i32_0 = arith.constant 0 : i32
    return %arg0, %c0_i32 : i32, i32
  }
}

</mosaic_0001>

<llo_original>
// kernel: encoder_forward.1
$region0: #{encoder_forward.1}
  #allocation0 [shape = 'u32[]', space=smem, size = 0x4, offset = 0x4, fixed_abs, tag = 'smem constant byte address 0x4 - core index']
  #allocation1 [shape = 'u32[144,128]{1,0:T(1,128)}', space=vmem, size = 0x12000, scoped, tag = 'internal scratch']
  %s0 = inlined_call_operand.hbm [shape: f32[8,32], index: 0, kind: input, shape index: {}]
  %s1 = inlined_call_operand.hbm [shape: bf16[32,256], index: 1, kind: input, shape index: {}]
  %s2 = inlined_call_operand.hbm [shape: bf16[256,256], index: 2, kind: input, shape index: {}]
  %s3 = inlined_call_operand.hbm [shape: bf16[256,256], index: 3, kind: input, shape index: {}]
  %s4 = inlined_call_operand.hbm [shape: f32[3,256], index: 4, kind: input, shape index: {}]
  %s5 = inlined_call_operand.hbm [shape: f32[8,256], index: 5, kind: output, shape index: {}]
  %s6 = sld [smem:[#allocation0]]
  $region50: #{encoder_forward.1} parent=0
    _
  %s8 = ssub.s32 1, %s6
  %s9 = scalar_select 0, %s8, %s6
  $region1: #{encoder_forward.1} parent=0
    #allocation2 [shape = 'u8[4096]{0}', space=vmem, size = 0x1000, scoped, tag = 'input window, operand 0, single buffered']
    #allocation3 [shape = 's32[1]{0}', space=sflag, size = 0x4, scoped, tag = 'scoped memory for encoder_forward.1']
    #allocation4 [shape = 's32[1]{0}', space=sflag, size = 0x4, scoped, tag = 'scoped memory for encoder_forward.1']
    #allocation5 [shape = 'u8[16384]{0}', space=vmem, size = 0x4000, scoped, tag = 'input window, operand 1, single buffered']
    #allocation6 [shape = 's32[1]{0}', space=sflag, size = 0x4, scoped, tag = 'scoped memory for encoder_forward.1']
    #allocation7 [shape = 'u8[131072]{0}', space=vmem, size = 0x20000, scoped, tag = 'input window, operand 2, single buffered']
    #allocation8 [shape = 'u8[131072]{0}', space=vmem, size = 0x20000, scoped, tag = 'input window, operand 3, single buffered']
    #allocation9 [shape = 's32[1]{0}', space=sflag, size = 0x4, scoped, tag = 'scoped memory for encoder_forward.1']
    #allocation10 [shape = 'u8[4096]{0}', space=vmem, size = 0x1000, scoped, tag = 'input window, operand 4, single buffered']
    #allocation11 [shape = 'u8[8192]{0}', space=vmem, size = 0x2000, scoped, tag = 'output window, operand 0, single buffered']
    %10 = vsyncpa [#allocation3], 0
    %11 = vsyncpa [#allocation6], 0
    %12 = vsyncpa [#allocation9], 0
    %13 = vsyncpa [#allocation4], 0
    // Predicated region
    $region2: #{encoder_forward.1} parent=1 // pred_check
      _
    $region3: #{encoder_forward.1} parent=1 // pred_check_branch
      %15 = sbr.rel (0) target = $region5
    $region4: #{encoder_forward.1} parent=1 // pred_region
      %s17 = ssub.s32 128, 128
      %18 = vsyncadd [#allocation3], %s17
      %s20 = sshll.u32 [#allocation2], 4
      %s21 = int_to_ptr.vmem [resolvable:$true] %s20
      %23 = dma.hbm_to_vmem [thread:$0]  %s0, 128, %s21, [#allocation3]
    $region5: #{encoder_forward.1} parent=1 // pred_fallthru
      _
    // Predicated region
    $region6: #{encoder_forward.1} parent=1 // pred_check
      _
    $region7: #{encoder_forward.1} parent=1 // pred_check_branch
      %25 = sbr.rel (0) target = $region9
    $region8: #{encoder_forward.1} parent=1 // pred_region
      %s27 = ssub.s32 512, 512
      %28 = vsyncadd [#allocation6], %s27
      %s29 = sshll.u32 [#allocation5], 4
      %s30 = int_to_ptr.vmem [resolvable:$true] %s29
      %35 = dma.hbm_to_vmem [thread:$0]  %s1, 512, %s30, [#allocation6], 128, 128, 8
    $region9: #{encoder_forward.1} parent=1 // pred_fallthru
      _
    // Predicated region
    $region10: #{encoder_forward.1} parent=1 // pred_check
      _
    $region11: #{encoder_forward.1} parent=1 // pred_check_branch
      %37 = sbr.rel (0) target = $region13
    $region12: #{encoder_forward.1} parent=1 // pred_region
      %s39 = ssub.s32 4096, 4096
      %40 = vsyncadd [#allocation6], %s39
      %s41 = sshll.u32 [#allocation7], 4
      %s42 = int_to_ptr.vmem [resolvable:$true] %s41
      %47 = dma.hbm_to_vmem [thread:$0]  %s2, 4096, %s42, [#allocation6], 128, 128, 8
    $region13: #{encoder_forward.1} parent=1 // pred_fallthru
      _
    // Predicated region
    $region14: #{encoder_forward.1} parent=1 // pred_check
      _
    $region15: #{encoder_forward.1} parent=1 // pred_check_branch
      %49 = sbr.rel (0) target = $region17
    $region16: #{encoder_forward.1} parent=1 // pred_region
      %s51 = ssub.s32 4096, 4096
      %52 = vsyncadd [#allocation9], %s51
      %s53 = sshll.u32 [#allocation8], 4
      %s54 = int_to_ptr.vmem [resolvable:$true] %s53
      %59 = dma.hbm_to_vmem [thread:$0]  %s3, 4096, %s54, [#allocation9], 128, 128, 8
    $region17: #{encoder_forward.1} parent=1 // pred_fallthru
      _
    // Predicated region
    $region18: #{encoder_forward.1} parent=1 // pred_check
      _
    $region19: #{encoder_forward.1} parent=1 // pred_check_branch
      %61 = sbr.rel (0) target = $region21
    $region20: #{encoder_forward.1} parent=1 // pred_region
      %s63 = ssub.s32 128, 128
      %64 = vsyncadd [#allocation9], %s63
      %s66 = sshll.u32 [#allocation10], 4
      %s67 = int_to_ptr.vmem [resolvable:$true] %s66
      %69 = dma.hbm_to_vmem [thread:$0]  %s4, 128, %s67, [#allocation9]
    $region21: #{encoder_forward.1} parent=1 // pred_fallthru
      _
    // Predicated region
    $region22: #{encoder_forward.1} parent=1 // pred_check
      _
    $region23: #{encoder_forward.1} parent=1 // pred_check_branch
      %71 = sbr.rel (0) target = $region25
    $region24: #{encoder_forward.1} parent=1 // pred_region
      %72 = dma.done [#allocation3], 128
    $region25: #{encoder_forward.1} parent=1 // pred_fallthru
      _
    // Predicated region
    $region26: #{encoder_forward.1} parent=1 // pred_check
      _
    $region27: #{encoder_forward.1} parent=1 // pred_check_branch
      %74 = sbr.rel (0) target = $region29
    $region28: #{encoder_forward.1} parent=1 // pred_region
      %75 = dma.done [#allocation6], 512
    $region29: #{encoder_forward.1} parent=1 // pred_fallthru
      _
    // Predicated region
    $region30: #{encoder_forward.1} parent=1 // pred_check
      _
    $region31: #{encoder_forward.1} parent=1 // pred_check_branch
      %77 = sbr.rel (0) target = $region33
    $region32: #{encoder_forward.1} parent=1 // pred_region
      %78 = dma.done [#allocation6], 4096
    $region33: #{encoder_forward.1} parent=1 // pred_fallthru
      _
    // Predicated region
    $region34: #{encoder_forward.1} parent=1 // pred_check
      _
    $region35: #{encoder_forward.1} parent=1 // pred_check_branch
      %80 = sbr.rel (0) target = $region37
    $region36: #{encoder_forward.1} parent=1 // pred_region
      %81 = dma.done [#allocation9], 4096
    $region37: #{encoder_forward.1} parent=1 // pred_fallthru
      _
    // Predicated region
    $region38: #{encoder_forward.1} parent=1 // pred_check
      _
    $region39: #{encoder_forward.1} parent=1 // pred_check_branch
      %83 = sbr.rel (0) target = $region41
    $region40: #{encoder_forward.1} parent=1 // pred_region
      %84 = dma.done [#allocation9], 128
    $region41: #{encoder_forward.1} parent=1 // pred_fallthru
      _
    %v86 = vld [vmem:[#allocation2] sm:$0xff]
    %v87 = vpack.c.bf16 %v86, %v86
    %v88 = vld [vmem:[#allocation10] sm:$0x77]
    %v89 = vld [vmem:[#allocation5] sm:$0xff]
    %v90 = vld [vmem:[#allocation5 + $0x8] sm:$0xff]
    %v91 = vld [vmem:[#allocation5 + $0x10] sm:$0xff]
    %v92 = vld [vmem:[#allocation5 + $0x18] sm:$0xff]
    %v94 = vlaneseq
    %v95 = vshrl.u32 %v94, 7
    %v96 = vsub.s32 0, %v95
    %v97 = vrot.slane %v88, %v96
    %v98 = vlaneseq
    %v99 = vshrl.u32 %v98, 7
    %v100 = vsub.s32 4, %v99
    %v101 = vrot.slane %v88, %v100
    %v104 = vlaneseq
    %v105 = vshrl.u32 %v104, 7
    %v106 = vsub.s32 0, %v105
    %v107 = vrot.slane %v97, %v106
    %v108 = vlaneseq
    %v109 = vshrl.u32 %v108, 7
    %v110 = vsub.s32 0, %v109
    %v111 = vrot.slane %v101, %v110
    %v116 = vunpack.c.l.b16 %v89
    %v117 = vunpack.c.h.b16 %v89
    %v118 = vunpack.c.l.b16 %v90
    %v119 = vunpack.c.h.b16 %v90
    %v120 = vunpack.c.l.b16 %v91
    %v121 = vunpack.c.h.b16 %v91
    %v122 = vunpack.c.l.b16 %v92
    %v123 = vunpack.c.h.b16 %v92
    %v124 = vpack.c.b16 %v118, %v116
    %v125 = vpack.c.b16 %v119, %v117
    %v126 = vpack.c.b16 %v122, %v120
    %v127 = vpack.c.b16 %v123, %v121
    %vm132 = vcmask 261120
    %v134 = vsel %vm132, %v87, 0
    %136 = vmatprep.subr.bf16.mxu0 %v125
    %137 = vmatpush1.bf16.msra.mxu0 %v124
    %138 = vmatprep.subr.bf16.mxu0 %v127
    %139 = vmatpush1.bf16.msra.mxu0 %v126
    %140 = vmatprep.subr.bf16.mxu0 0
    %141 = vmatpush1.bf16.msra.mxu0 0
    %142 = vmatprep.subr.bf16.mxu0 0
    %143 = vmatpush1.bf16.msra.mxu0 0
    %144 = vmatprep.subr.bf16.mxu0 0
    %145 = vmatpush1.bf16.msra.mxu0 0
    %146 = vmatprep.subr.bf16.mxu0 0
    %147 = vmatpush1.bf16.msra.mxu0 0
    %148 = vmatprep.subr.bf16.mxu0 0
    %149 = vmatpush1.bf16.msra.mxu0 0
    %150 = vmatprep.subr.bf16.mxu0 0
    %151 = vmatpush1.bf16.msra.mxu0 0
    %152 = vmatprep.subr.bf16.mxu0 0
    %153 = vmatpush1.bf16.msra.mxu0 0
    %154 = vmatprep.subr.bf16.mxu0 0
    %155 = vmatpush1.bf16.msra.mxu0 0
    %156 = vmatprep.subr.bf16.mxu0 0
    %157 = vmatpush1.bf16.msra.mxu0 0
    %158 = vmatprep.subr.bf16.mxu0 0
    %159 = vmatpush1.bf16.msra.mxu0 0
    %160 = vmatprep.subr.bf16.mxu0 0
    %161 = vmatpush1.bf16.msra.mxu0 0
    %162 = vmatprep.subr.bf16.mxu0 0
    %163 = vmatpush1.bf16.msra.mxu0 0
    %164 = vmatprep.subr.bf16.mxu0 0
    %165 = vmatpush1.bf16.msra.mxu0 0
    %166 = vmatprep.subr.bf16.mxu0 0
    %167 = vmatpush1.bf16.msra.mxu0 0
    %168 = vmatprep.mubr.bf16.mxu0 0
    %169 = vmatmul.mubr.bf16.gmra.mrb[0].mxu0 %v134
    %v170 = vpop.f32.mrb[0].mxu0
    %v171 = vadd.f32 %v107, %v170
    %v172 = vpop.f32.mrb[0].mxu0
    %v173 = vadd.f32 %v111, %v172
    %v174 = vpop.f32.mrb[0].mxu0
    %v175 = vpop.f32.mrb[0].mxu0
    %176 = vdwg.mxu0
    %v177 = vmax.f32 %v171, 0.0
    %v178 = vmax.f32 %v173, 0.0
    %v179 = vpack.c.bf16 %v177, %v177
    %v180 = vpack.c.bf16 %v178, %v178
    %v181 = vld [vmem:[#allocation7] sm:$0xff]
    %v182 = vld [vmem:[#allocation7 + $0x8] sm:$0xff]
    %v183 = vld [vmem:[#allocation7 + $0x10] sm:$0xff]
    %v184 = vld [vmem:[#allocation7 + $0x18] sm:$0xff]
    %v185 = vld [vmem:[#allocation7 + $0x20] sm:$0xff]
    %v186 = vld [vmem:[#allocation7 + $0x28] sm:$0xff]
    %v187 = vld [vmem:[#allocation7 + $0x30] sm:$0xff]
    %v188 = vld [vmem:[#allocation7 + $0x38] sm:$0xff]
    %v189 = vld [vmem:[#allocation7 + $0x40] sm:$0xff]
    %v190 = vld [vmem:[#allocation7 + $0x48] sm:$0xff]
    %v191 = vld [vmem:[#allocation7 + $0x50] sm:$0xff]
    %v192 = vld [vmem:[#allocation7 + $0x58] sm:$0xff]
    %v193 = vld [vmem:[#allocation7 + $0x60] sm:$0xff]
    %v194 = vld [vmem:[#allocation7 + $0x68] sm:$0xff]
    %v195 = vld [vmem:[#allocation7 + $0x70] sm:$0xff]
    %v196 = vld [vmem:[#allocation7 + $0x78] sm:$0xff]
    %v197 = vld [vmem:[#allocation7 + $0x80] sm:$0xff]
    %v198 = vld [vmem:[#allocation7 + $0x88] sm:$0xff]
    %v199 = vld [vmem:[#allocation7 + $0x90] sm:$0xff]
    %v200 = vld [vmem:[#allocation7 + $0x98] sm:$0xff]
    %v201 = vld [vmem:[#allocation7 + $0xa0] sm:$0xff]
    %v202 = vld [vmem:[#allocation7 + $0xa8] sm:$0xff]
    %v203 = vld [vmem:[#allocation7 + $0xb0] sm:$0xff]
    %v204 = vld [vmem:[#allocation7 + $0xb8] sm:$0xff]
    %v205 = vld [vmem:[#allocation7 + $0xc0] sm:$0xff]
    %v206 = vld [vmem:[#allocation7 + $0xc8] sm:$0xff]
    %v207 = vld [vmem:[#allocation7 + $0xd0] sm:$0xff]
    %v208 = vld [vmem:[#allocation7 + $0xd8] sm:$0xff]
    %v209 = vld [vmem:[#allocation7 + $0xe0] sm:$0xff]
    %v210 = vld [vmem:[#allocation7 + $0xe8] sm:$0xff]
    %v211 = vld [vmem:[#allocation7 + $0xf0] sm:$0xff]
    %v212 = vld [vmem:[#allocation7 + $0xf8] sm:$0xff]
    %v213 = vlaneseq
    %v214 = vshrl.u32 %v213, 7
    %v215 = vsub.s32 1, %v214
    %v216 = vrot.slane %v88, %v215
    %v217 = vlaneseq
    %v218 = vshrl.u32 %v217, 7
    %v219 = vsub.s32 5, %v218
    %v220 = vrot.slane %v88, %v219
    %v223 = vlaneseq
    %v224 = vshrl.u32 %v223, 7
    %v225 = vsub.s32 1, %v224
    %v226 = vrot.slane %v216, %v225
    %v227 = vlaneseq
    %v228 = vshrl.u32 %v227, 7
    %v229 = vsub.s32 1, %v228
    %v230 = vrot.slane %v220, %v229
    %v263 = vunpack.c.l.b16 %v181
    %v264 = vunpack.c.h.b16 %v181
    %v265 = vunpack.c.l.b16 %v182
    %v266 = vunpack.c.h.b16 %v182
    %v267 = vunpack.c.l.b16 %v183
    %v268 = vunpack.c.h.b16 %v183
    %v269 = vunpack.c.l.b16 %v184
    %v270 = vunpack.c.h.b16 %v184
    %v271 = vunpack.c.l.b16 %v185
    %v272 = vunpack.c.h.b16 %v185
    %v273 = vunpack.c.l.b16 %v186
    %v274 = vunpack.c.h.b16 %v186
    %v275 = vunpack.c.l.b16 %v187
    %v276 = vunpack.c.h.b16 %v187
    %v277 = vunpack.c.l.b16 %v188
    %v278 = vunpack.c.h.b16 %v188
    %v279 = vunpack.c.l.b16 %v189
    %v280 = vunpack.c.h.b16 %v189
    %v281 = vunpack.c.l.b16 %v190
    %v282 = vunpack.c.h.b16 %v190
    %v283 = vunpack.c.l.b16 %v191
    %v284 = vunpack.c.h.b16 %v191
    %v285 = vunpack.c.l.b16 %v192
    %v286 = vunpack.c.h.b16 %v192
    %v287 = vunpack.c.l.b16 %v193
    %v288 = vunpack.c.h.b16 %v193
    %v289 = vunpack.c.l.b16 %v194
    %v290 = vunpack.c.h.b16 %v194
    %v291 = vunpack.c.l.b16 %v195
    %v292 = vunpack.c.h.b16 %v195
    %v293 = vunpack.c.l.b16 %v196
    %v294 = vunpack.c.h.b16 %v196
    %v295 = vunpack.c.l.b16 %v197
    %v296 = vunpack.c.h.b16 %v197
    %v297 = vunpack.c.l.b16 %v198
    %v298 = vunpack.c.h.b16 %v198
    %v299 = vunpack.c.l.b16 %v199
    %v300 = vunpack.c.h.b16 %v199
    %v301 = vunpack.c.l.b16 %v200
    %v302 = vunpack.c.h.b16 %v200
    %v303 = vunpack.c.l.b16 %v201
    %v304 = vunpack.c.h.b16 %v201
    %v305 = vunpack.c.l.b16 %v202
    %v306 = vunpack.c.h.b16 %v202
    %v307 = vunpack.c.l.b16 %v203
    %v308 = vunpack.c.h.b16 %v203
    %v309 = vunpack.c.l.b16 %v204
    %v310 = vunpack.c.h.b16 %v204
    %v311 = vunpack.c.l.b16 %v205
    %v312 = vunpack.c.h.b16 %v205
    %v313 = vunpack.c.l.b16 %v206
    %v314 = vunpack.c.h.b16 %v206
    %v315 = vunpack.c.l.b16 %v207
    %v316 = vunpack.c.h.b16 %v207
    %v317 = vunpack.c.l.b16 %v208
    %v318 = vunpack.c.h.b16 %v208
    %v319 = vunpack.c.l.b16 %v209
    %v320 = vunpack.c.h.b16 %v209
    %v321 = vunpack.c.l.b16 %v210
    %v322 = vunpack.c.h.b16 %v210
    %v323 = vunpack.c.l.b16 %v211
    %v324 = vunpack.c.h.b16 %v211
    %v325 = vunpack.c.l.b16 %v212
    %v326 = vunpack.c.h.b16 %v212
    %v327 = vpack.c.b16 %v265, %v263
    %v328 = vpack.c.b16 %v266, %v264
    %v329 = vpack.c.b16 %v269, %v267
    %v330 = vpack.c.b16 %v270, %v268
    %v331 = vpack.c.b16 %v273, %v271
    %v332 = vpack.c.b16 %v274, %v272
    %v333 = vpack.c.b16 %v277, %v275
    %v334 = vpack.c.b16 %v278, %v276
    %v335 = vpack.c.b16 %v281, %v279
    %v336 = vpack.c.b16 %v282, %v280
    %v337 = vpack.c.b16 %v285, %v283
    %v338 = vpack.c.b16 %v286, %v284
    %v339 = vpack.c.b16 %v289, %v287
    %v340 = vpack.c.b16 %v290, %v288
    %v341 = vpack.c.b16 %v293, %v291
    %v342 = vpack.c.b16 %v294, %v292
    %v343 = vpack.c.b16 %v297, %v295
    %v344 = vpack.c.b16 %v298, %v296
    %v345 = vpack.c.b16 %v301, %v299
    %v346 = vpack.c.b16 %v302, %v300
    %v347 = vpack.c.b16 %v305, %v303
    %v348 = vpack.c.b16 %v306, %v304
    %v349 = vpack.c.b16 %v309, %v307
    %v350 = vpack.c.b16 %v310, %v308
    %v351 = vpack.c.b16 %v313, %v311
    %v352 = vpack.c.b16 %v314, %v312
    %v353 = vpack.c.b16 %v317, %v315
    %v354 = vpack.c.b16 %v318, %v316
    %v355 = vpack.c.b16 %v321, %v319
    %v356 = vpack.c.b16 %v322, %v320
    %v357 = vpack.c.b16 %v325, %v323
    %v358 = vpack.c.b16 %v326, %v324
    %391 = vmatprep.subr.bf16.mxu0 %v328
    %392 = vmatpush1.bf16.msra.mxu0 %v327
    %393 = vmatprep.subr.bf16.mxu0 %v330
    %394 = vmatpush1.bf16.msra.mxu0 %v329
    %395 = vmatprep.subr.bf16.mxu0 %v332
    %396 = vmatpush1.bf16.msra.mxu0 %v331
    %397 = vmatprep.subr.bf16.mxu0 %v334
    %398 = vmatpush1.bf16.msra.mxu0 %v333
    %399 = vmatprep.subr.bf16.mxu0 %v336
    %400 = vmatpush1.bf16.msra.mxu0 %v335
    %401 = vmatprep.subr.bf16.mxu0 %v338
    %402 = vmatpush1.bf16.msra.mxu0 %v337
    %403 = vmatprep.subr.bf16.mxu0 %v340
    %404 = vmatpush1.bf16.msra.mxu0 %v339
    %405 = vmatprep.subr.bf16.mxu0 %v342
    %406 = vmatpush1.bf16.msra.mxu0 %v341
    %407 = vmatprep.subr.bf16.mxu0 %v344
    %408 = vmatpush1.bf16.msra.mxu0 %v343
    %409 = vmatprep.subr.bf16.mxu0 %v346
    %410 = vmatpush1.bf16.msra.mxu0 %v345
    %411 = vmatprep.subr.bf16.mxu0 %v348
    %412 = vmatpush1.bf16.msra.mxu0 %v347
    %413 = vmatprep.subr.bf16.mxu0 %v350
    %414 = vmatpush1.bf16.msra.mxu0 %v349
    %415 = vmatprep.subr.bf16.mxu0 %v352
    %416 = vmatpush1.bf16.msra.mxu0 %v351
    %417 = vmatprep.subr.bf16.mxu0 %v354
    %418 = vmatpush1.bf16.msra.mxu0 %v353
    %419 = vmatprep.subr.bf16.mxu0 %v356
    %420 = vmatpush1.bf16.msra.mxu0 %v355
    %421 = vmatprep.subr.bf16.mxu0 %v358
    %422 = vmatpush1.bf16.msra.mxu0 %v357
    %423 = vmatprep.mubr.bf16.mxu0 %v180
    %424 = vmatmul.mubr.bf16.gmra.mrb[0].mxu0 %v179
    %v425 = vpop.f32.mrb[0].mxu0
    %v426 = vadd.f32 %v226, %v425
    %v427 = vpop.f32.mrb[0].mxu0
    %v428 = vadd.f32 %v230, %v427
    %v429 = vpop.f32.mrb[0].mxu0
    %v430 = vpop.f32.mrb[0].mxu0
    %431 = vdwg.mxu0
    %v432 = vmax.f32 %v426, 0.0
    %v433 = vmax.f32 %v428, 0.0
    %v434 = vpack.c.bf16 %v432, %v432
    %v435 = vpack.c.bf16 %v433, %v433
    %v436 = vld [vmem:[#allocation8] sm:$0xff]
    %v437 = vld [vmem:[#allocation8 + $0x8] sm:$0xff]
    %v438 = vld [vmem:[#allocation8 + $0x10] sm:$0xff]
    %v439 = vld [vmem:[#allocation8 + $0x18] sm:$0xff]
    %v440 = vld [vmem:[#allocation8 + $0x20] sm:$0xff]
    %v441 = vld [vmem:[#allocation8 + $0x28] sm:$0xff]
    %v442 = vld [vmem:[#allocation8 + $0x30] sm:$0xff]
    %v443 = vld [vmem:[#allocation8 + $0x38] sm:$0xff]
    %v444 = vld [vmem:[#allocation8 + $0x40] sm:$0xff]
    %v445 = vld [vmem:[#allocation8 + $0x48] sm:$0xff]
    %v446 = vld [vmem:[#allocation8 + $0x50] sm:$0xff]
    %v447 = vld [vmem:[#allocation8 + $0x58] sm:$0xff]
    %v448 = vld [vmem:[#allocation8 + $0x60] sm:$0xff]
    %v449 = vld [vmem:[#allocation8 + $0x68] sm:$0xff]
    %v450 = vld [vmem:[#allocation8 + $0x70] sm:$0xff]
    %v451 = vld [vmem:[#allocation8 + $0x78] sm:$0xff]
    %v452 = vld [vmem:[#allocation8 + $0x80] sm:$0xff]
    %v453 = vld [vmem:[#allocation8 + $0x88] sm:$0xff]
    %v454 = vld [vmem:[#allocation8 + $0x90] sm:$0xff]
    %v455 = vld [vmem:[#allocation8 + $0x98] sm:$0xff]
    %v456 = vld [vmem:[#allocation8 + $0xa0] sm:$0xff]
    %v457 = vld [vmem:[#allocation8 + $0xa8] sm:$0xff]
    %v458 = vld [vmem:[#allocation8 + $0xb0] sm:$0xff]
    %v459 = vld [vmem:[#allocation8 + $0xb8] sm:$0xff]
    %v460 = vld [vmem:[#allocation8 + $0xc0] sm:$0xff]
    %v461 = vld [vmem:[#allocation8 + $0xc8] sm:$0xff]
    %v462 = vld [vmem:[#allocation8 + $0xd0] sm:$0xff]
    %v463 = vld [vmem:[#allocation8 + $0xd8] sm:$0xff]
    %v464 = vld [vmem:[#allocation8 + $0xe0] sm:$0xff]
    %v465 = vld [vmem:[#allocation8 + $0xe8] sm:$0xff]
    %v466 = vld [vmem:[#allocation8 + $0xf0] sm:$0xff]
    %v467 = vld [vmem:[#allocation8 + $0xf8] sm:$0xff]
    %v468 = vlaneseq
    %v469 = vshrl.u32 %v468, 7
    %v470 = vsub.s32 2, %v469
    %v471 = vrot.slane %v88, %v470
    %v472 = vlaneseq
    %v473 = vshrl.u32 %v472, 7
    %v474 = vsub.s32 6, %v473
    %v475 = vrot.slane %v88, %v474
    %v478 = vlaneseq
    %v479 = vshrl.u32 %v478, 7
    %v480 = vsub.s32 2, %v479
    %v481 = vrot.slane %v471, %v480
    %v482 = vlaneseq
    %v483 = vshrl.u32 %v482, 7
    %v484 = vsub.s32 2, %v483
    %v485 = vrot.slane %v475, %v484
    %v518 = vunpack.c.l.b16 %v436
    %v519 = vunpack.c.h.b16 %v436
    %v520 = vunpack.c.l.b16 %v437
    %v521 = vunpack.c.h.b16 %v437
    %v522 = vunpack.c.l.b16 %v438
    %v523 = vunpack.c.h.b16 %v438
    %v524 = vunpack.c.l.b16 %v439
    %v525 = vunpack.c.h.b16 %v439
    %v526 = vunpack.c.l.b16 %v440
    %v527 = vunpack.c.h.b16 %v440
    %v528 = vunpack.c.l.b16 %v441
    %v529 = vunpack.c.h.b16 %v441
    %v530 = vunpack.c.l.b16 %v442
    %v531 = vunpack.c.h.b16 %v442
    %v532 = vunpack.c.l.b16 %v443
    %v533 = vunpack.c.h.b16 %v443
    %v534 = vunpack.c.l.b16 %v444
    %v535 = vunpack.c.h.b16 %v444
    %v536 = vunpack.c.l.b16 %v445
    %v537 = vunpack.c.h.b16 %v445
    %v538 = vunpack.c.l.b16 %v446
    %v539 = vunpack.c.h.b16 %v446
    %v540 = vunpack.c.l.b16 %v447
    %v541 = vunpack.c.h.b16 %v447
    %v542 = vunpack.c.l.b16 %v448
    %v543 = vunpack.c.h.b16 %v448
    %v544 = vunpack.c.l.b16 %v449
    %v545 = vunpack.c.h.b16 %v449
    %v546 = vunpack.c.l.b16 %v450
    %v547 = vunpack.c.h.b16 %v450
    %v548 = vunpack.c.l.b16 %v451
    %v549 = vunpack.c.h.b16 %v451
    %v550 = vunpack.c.l.b16 %v452
    %v551 = vunpack.c.h.b16 %v452
    %v552 = vunpack.c.l.b16 %v453
    %v553 = vunpack.c.h.b16 %v453
    %v554 = vunpack.c.l.b16 %v454
    %v555 = vunpack.c.h.b16 %v454
    %v556 = vunpack.c.l.b16 %v455
    %v557 = vunpack.c.h.b16 %v455
    %v558 = vunpack.c.l.b16 %v456
    %v559 = vunpack.c.h.b16 %v456
    %v560 = vunpack.c.l.b16 %v457
    %v561 = vunpack.c.h.b16 %v457
    %v562 = vunpack.c.l.b16 %v458
    %v563 = vunpack.c.h.b16 %v458
    %v564 = vunpack.c.l.b16 %v459
    %v565 = vunpack.c.h.b16 %v459
    %v566 = vunpack.c.l.b16 %v460
    %v567 = vunpack.c.h.b16 %v460
    %v568 = vunpack.c.l.b16 %v461
    %v569 = vunpack.c.h.b16 %v461
    %v570 = vunpack.c.l.b16 %v462
    %v571 = vunpack.c.h.b16 %v462
    %v572 = vunpack.c.l.b16 %v463
    %v573 = vunpack.c.h.b16 %v463
    %v574 = vunpack.c.l.b16 %v464
    %v575 = vunpack.c.h.b16 %v464
    %v576 = vunpack.c.l.b16 %v465
    %v577 = vunpack.c.h.b16 %v465
    %v578 = vunpack.c.l.b16 %v466
    %v579 = vunpack.c.h.b16 %v466
    %v580 = vunpack.c.l.b16 %v467
    %v581 = vunpack.c.h.b16 %v467
    %v582 = vpack.c.b16 %v520, %v518
    %v583 = vpack.c.b16 %v521, %v519
    %v584 = vpack.c.b16 %v524, %v522
    %v585 = vpack.c.b16 %v525, %v523
    %v586 = vpack.c.b16 %v528, %v526
    %v587 = vpack.c.b16 %v529, %v527
    %v588 = vpack.c.b16 %v532, %v530
    %v589 = vpack.c.b16 %v533, %v531
    %v590 = vpack.c.b16 %v536, %v534
    %v591 = vpack.c.b16 %v537, %v535
    %v592 = vpack.c.b16 %v540, %v538
    %v593 = vpack.c.b16 %v541, %v539
    %v594 = vpack.c.b16 %v544, %v542
    %v595 = vpack.c.b16 %v545, %v543
    %v596 = vpack.c.b16 %v548, %v546
    %v597 = vpack.c.b16 %v549, %v547
    %v598 = vpack.c.b16 %v552, %v550
    %v599 = vpack.c.b16 %v553, %v551
    %v600 = vpack.c.b16 %v556, %v554
    %v601 = vpack.c.b16 %v557, %v555
    %v602 = vpack.c.b16 %v560, %v558
    %v603 = vpack.c.b16 %v561, %v559
    %v604 = vpack.c.b16 %v564, %v562
    %v605 = vpack.c.b16 %v565, %v563
    %v606 = vpack.c.b16 %v568, %v566
    %v607 = vpack.c.b16 %v569, %v567
    %v608 = vpack.c.b16 %v572, %v570
    %v609 = vpack.c.b16 %v573, %v571
    %v610 = vpack.c.b16 %v576, %v574
    %v611 = vpack.c.b16 %v577, %v575
    %v612 = vpack.c.b16 %v580, %v578
    %v613 = vpack.c.b16 %v581, %v579
    %646 = vmatprep.subr.bf16.mxu0 %v583
    %647 = vmatpush1.bf16.msra.mxu0 %v582
    %648 = vmatprep.subr.bf16.mxu0 %v585
    %649 = vmatpush1.bf16.msra.mxu0 %v584
    %650 = vmatprep.subr.bf16.mxu0 %v587
    %651 = vmatpush1.bf16.msra.mxu0 %v586
    %652 = vmatprep.subr.bf16.mxu0 %v589
    %653 = vmatpush1.bf16.msra.mxu0 %v588
    %654 = vmatprep.subr.bf16.mxu0 %v591
    %655 = vmatpush1.bf16.msra.mxu0 %v590
    %656 = vmatprep.subr.bf16.mxu0 %v593
    %657 = vmatpush1.bf16.msra.mxu0 %v592
    %658 = vmatprep.subr.bf16.mxu0 %v595
    %659 = vmatpush1.bf16.msra.mxu0 %v594
    %660 = vmatprep.subr.bf16.mxu0 %v597
    %661 = vmatpush1.bf16.msra.mxu0 %v596
    %662 = vmatprep.subr.bf16.mxu0 %v599
    %663 = vmatpush1.bf16.msra.mxu0 %v598
    %664 = vmatprep.subr.bf16.mxu0 %v601
    %665 = vmatpush1.bf16.msra.mxu0 %v600
    %666 = vmatprep.subr.bf16.mxu0 %v603
    %667 = vmatpush1.bf16.msra.mxu0 %v602
    %668 = vmatprep.subr.bf16.mxu0 %v605
    %669 = vmatpush1.bf16.msra.mxu0 %v604
    %670 = vmatprep.subr.bf16.mxu0 %v607
    %671 = vmatpush1.bf16.msra.mxu0 %v606
    %672 = vmatprep.subr.bf16.mxu0 %v609
    %673 = vmatpush1.bf16.msra.mxu0 %v608
    %674 = vmatprep.subr.bf16.mxu0 %v611
    %675 = vmatpush1.bf16.msra.mxu0 %v610
    %676 = vmatprep.subr.bf16.mxu0 %v613
    %677 = vmatpush1.bf16.msra.mxu0 %v612
    %678 = vmatprep.mubr.bf16.mxu0 %v435
    %679 = vmatmul.mubr.bf16.gmra.mrb[0].mxu0 %v434
    %v680 = vpop.f32.mrb[0].mxu0
    %v681 = vadd.f32 %v481, %v680
    %v682 = vpop.f32.mrb[0].mxu0
    %v683 = vadd.f32 %v485, %v682
    %v684 = vpop.f32.mrb[0].mxu0
    %v685 = vpop.f32.mrb[0].mxu0
    %686 = vdwg.mxu0
    %687 = vst [vmem:[#allocation11] sm:$0xff] %v681
    %688 = vst [vmem:[#allocation11 + $0x8] sm:$0xff] %v683
    // Predicated region
    $region42: #{encoder_forward.1} parent=1 // pred_check
      _
    $region43: #{encoder_forward.1} parent=1 // pred_check_branch
      %690 = sbr.rel (0) target = $region45
    $region44: #{encoder_forward.1} parent=1 // pred_region
      %s692 = ssub.s32 256, 256
      %693 = vsyncadd [#allocation4], %s692
      %s695 = sshll.u32 [#allocation11], 4
      %s696 = int_to_ptr.vmem [resolvable:$true] %s695
      %698 = dma.vmem_to_hbm [thread:$0]  %s696, 256, %s5, [#allocation4]
    $region45: #{encoder_forward.1} parent=1 // pred_fallthru
      _
    // Predicated region
    $region46: #{encoder_forward.1} parent=1 // pred_check
      _
    $region47: #{encoder_forward.1} parent=1 // pred_check_branch
      %700 = sbr.rel (0) target = $region49
    $region48: #{encoder_forward.1} parent=1 // pred_region
      %701 = dma.done [#allocation4], 256
    $region49: #{encoder_forward.1} parent=1 // pred_fallthru
      _
    %702 = vsyncpa [#allocation3], 1
    %703 = vsyncpa [#allocation6], 1
    %704 = vsyncpa [#allocation9], 1
    %705 = vsyncpa [#allocation4], 1

</llo_original>
